<compile_context>
chip_gen: v7x
topology: tpu7x:2x2x1
jax: 0.10.0
libtpu: 0.0.40
codegen_flags: <defaults>
</compile_context>

<pallas_src>
import jax
import jax.numpy as jnp
from jax.experimental import pallas as pl
from jax.experimental.pallas import tpu as pltpu


def mlp_kernel(x_ref, w1_ref, b1_ref, w2_ref, b2_ref, o_ref):
    # x_ref: (4, TILE_N)  w1_ref: (10, 4)  b1_ref: (10, 1)
    # w2_ref: (3, 10)     b2_ref: (3, 1)   o_ref: (3, TILE_N)
    x = x_ref[...]
    # fc1 + ReLU: (10, 4) @ (4, TILE_N) + (10, 1) -> (10, TILE_N)
    h = jnp.dot(w1_ref[...], x, preferred_element_type=jnp.float32)
    h = jnp.maximum(h + b1_ref[...], 0.0)
    # fc2: (3, 10) @ (10, TILE_N) + (3, 1) -> (3, TILE_N)
    y = jnp.dot(w2_ref[...], h, preferred_element_type=jnp.float32)
    o_ref[...] = (y + b2_ref[...]).astype(o_ref.dtype)


def net_forward(x, w1, b1, w2, b2, *, tile_n=512):
    """Forward pass of Net.

    x:  (N, 4) float32  (PyTorch convention)
    w1: (10, 4), b1: (10, 1), w2: (3, 10), b2: (3, 1)  (PyTorch (out, in) weights)
    returns (N, 3) float32, identical math to F.relu(x @ W1.T + b1) @ W2.T + b2.
    """
    assert tile_n % 128 == 0, "tile_n must be a multiple of the 128-lane width"
    n = x.shape[0]
    in_f, hid, out_f = w1.shape[1], w1.shape[0], w2.shape[0]

    # Lane-dense layout: batch on the lane axis, padded to a tile multiple.
    n_pad = tile_n * pl.cdiv(n, tile_n)
    xt = jnp.transpose(x)  # (4, N)
    if n_pad != n:
        xt = jnp.pad(xt, ((0, 0), (0, n_pad - n)))

    out_t = pl.pallas_call(
        mlp_kernel,
        out_shape=jax.ShapeDtypeStruct((out_f, n_pad), jnp.float32),
        grid_spec=pltpu.PrefetchScalarGridSpec(
            num_scalar_prefetch=0,
            grid=(n_pad // tile_n,),
            in_specs=[
                # Activations stream along the batch/lane axis.
                pl.BlockSpec((in_f, tile_n), lambda i: (0, i)),
                # Weights & biases stay resident across all grid steps.
                pl.BlockSpec((hid, in_f), lambda i: (0, 0)),
                pl.BlockSpec((hid, 1), lambda i: (0, 0)),
                pl.BlockSpec((out_f, hid), lambda i: (0, 0)),
                pl.BlockSpec((out_f, 1), lambda i: (0, 0)),
            ],
            out_specs=pl.BlockSpec((out_f, tile_n), lambda i: (0, i)),
        ),
        compiler_params=pltpu.CompilerParams(
            dimension_semantics=("parallel",),  # 2-TC sharding on v7x
        ),
    )(xt, w1, b1, w2, b2)

    # Back to PyTorch layout; drop batch padding.
    return jnp.transpose(out_t[:, :n])


def init_params(key):
    """Parameters with PyTorch nn.Linear shapes ((out, in) weights) and
    the default U(-1/sqrt(fan_in), 1/sqrt(fan_in)) init distribution."""
    k1, k2, k3, k4 = jax.random.split(key, 4)
    fan1, fan2 = 4, 10
    bound1 = 1.0 / jnp.sqrt(jnp.float32(fan1))
    bound2 = 1.0 / jnp.sqrt(jnp.float32(fan2))
    w1 = jax.random.uniform(k1, (10, 4), jnp.float32, -bound1, bound1)
    b1 = jax.random.uniform(k2, (10, 1), jnp.float32, -bound1, bound1)
    w2 = jax.random.uniform(k3, (3, 10), jnp.float32, -bound2, bound2)
    b2 = jax.random.uniform(k4, (3, 1), jnp.float32, -bound2, bound2)
    return w1, b1, w2, b2


if __name__ == "__main__":
    key = jax.random.PRNGKey(0)
    k_x, k_p = jax.random.split(key)

    # Iris-sized batch: 150 samples x 4 features. tile_n=128 keeps the demo
    # small while exercising a multi-step (2-step) pipelined grid + padding.
    n = 150
    x = jax.random.uniform(k_x, (n, 4), jnp.float32, 0.0, 8.0)
    w1, b1, w2, b2 = init_params(k_p)

    out = net_forward(x, w1, b1, w2, b2, tile_n=128)
    out = jax.block_until_ready(out)

    # Reference check in plain JAX (same math as the PyTorch forward).
    h_ref = jnp.maximum(x @ w1.T + b1.T, 0.0)
    ref = h_ref @ w2.T + b2.T
    assert out.shape == (n, 3)
    assert jnp.allclose(out, ref, atol=1e-5, rtol=1e-5)

    print("KERNEL_OK")
</pallas_src>

<mosaic_0001>
module attributes {stable_mosaic.version = 11 : i64} {
  func.func @mlp_kernel(%arg0: i32, %arg1: memref<4x128xf32, #tpu.memory_space<vmem>>, %arg2: memref<10x4xf32, #tpu.memory_space<vmem>>, %arg3: memref<10x1xf32, #tpu.memory_space<vmem>>, %arg4: memref<3x10xf32, #tpu.memory_space<vmem>>, %arg5: memref<3x1xf32, #tpu.memory_space<vmem>>, %arg6: memref<3x128xf32, #tpu.memory_space<vmem>>) attributes {dimension_semantics = [#tpu.dimension_semantics<parallel>], iteration_bounds = array<i64: 2>, scalar_prefetch = 0 : i64, scratch_operands = 0 : i64, tpu.core_type = #tpu.core_type<tc>, window_params = [{transform_indices = @transform_0, window_bounds = array<i64: 4, 128>}, {pipeline_mode = #tpu.pipeline_mode<synchronous>, transform_indices = @transform_1, window_bounds = array<i64: 10, 4>}, {pipeline_mode = #tpu.pipeline_mode<synchronous>, transform_indices = @transform_2, window_bounds = array<i64: 10, 1>}, {pipeline_mode = #tpu.pipeline_mode<synchronous>, transform_indices = @transform_3, window_bounds = array<i64: 3, 10>}, {pipeline_mode = #tpu.pipeline_mode<synchronous>, transform_indices = @transform_4, window_bounds = array<i64: 3, 1>}, {transform_indices = @transform_5, window_bounds = array<i64: 3, 128>}]} {
    %c0 = arith.constant 0 : index
    %c0_0 = arith.constant 0 : index
    %0 = vector.load %arg1[%c0, %c0_0] : memref<4x128xf32, #tpu.memory_space<vmem>>, vector<4x128xf32>
    %c0_1 = arith.constant 0 : index
    %c0_2 = arith.constant 0 : index
    %1 = vector.load %arg2[%c0_1, %c0_2] : memref<10x4xf32, #tpu.memory_space<vmem>>, vector<10x4xf32>
    %cst = arith.constant dense<0.000000e+00> : vector<10x128xf32>
    %2 = tpu.matmul %1, %0, %cst {dimension_numbers = #tpu.dot_dimension_numbers<[1], [0], [0], [1], [0, 0, 1, 1], [], []>} : vector<10x4xf32>, vector<4x128xf32>, vector<10x128xf32> -> vector<10x128xf32>
    %c0_3 = arith.constant 0 : index
    %c0_4 = arith.constant 0 : index
    %3 = vector.load %arg3[%c0_3, %c0_4] : memref<10x1xf32, #tpu.memory_space<vmem>>, vector<10x1xf32>
    %4 = vector.broadcast %3 : vector<10x1xf32> to vector<10x128xf32>
    %5 = arith.addf %2, %4 : vector<10x128xf32>
    %cst_5 = arith.constant 0.000000e+00 : f32
    %6 = vector.broadcast %cst_5 : f32 to vector<10x128xf32>
    %7 = arith.maximumf %5, %6 : vector<10x128xf32>
    %c0_6 = arith.constant 0 : index
    %c0_7 = arith.constant 0 : index
    %8 = vector.load %arg4[%c0_6, %c0_7] : memref<3x10xf32, #tpu.memory_space<vmem>>, vector<3x10xf32>
    %cst_8 = arith.constant dense<0.000000e+00> : vector<3x128xf32>
    %9 = tpu.matmul %8, %7, %cst_8 {dimension_numbers = #tpu.dot_dimension_numbers<[1], [0], [0], [1], [0, 0, 1, 1], [], []>} : vector<3x10xf32>, vector<10x128xf32>, vector<3x128xf32> -> vector<3x128xf32>
    %c0_9 = arith.constant 0 : index
    %c0_10 = arith.constant 0 : index
    %10 = vector.load %arg5[%c0_9, %c0_10] : memref<3x1xf32, #tpu.memory_space<vmem>>, vector<3x1xf32>
    %11 = vector.broadcast %10 : vector<3x1xf32> to vector<3x128xf32>
    %12 = arith.addf %9, %11 : vector<3x128xf32>
    %c0_11 = arith.constant 0 : index
    %c0_12 = arith.constant 0 : index
    %13 = vector.load %arg6[%c0_11, %c0_12] : memref<3x128xf32, #tpu.memory_space<vmem>>, vector<3x128xf32>
    tpu.vector_store %arg6[%c0_11, %c0_12], %12 {strides = array<i32>} : memref<3x128xf32, #tpu.memory_space<vmem>>, vector<3x128xf32>,
    return
  }
  func.func @transform_0(%arg0: i32) -> (i32, i32) {
    %c0_i32 = arith.constant 0 : i32
    %c0_i32_0 = arith.constant 0 : i32
    return %c0_i32, %arg0 : i32, i32
  }
  func.func @transform_1(%arg0: i32) -> (i32, i32) {
    %c0_i32 = arith.constant 0 : i32
    %c0_i32_0 = arith.constant 0 : i32
    %c0_i32_1 = arith.constant 0 : i32
    return %c0_i32, %c0_i32_0 : i32, i32
  }
  func.func @transform_2(%arg0: i32) -> (i32, i32) {
    %c0_i32 = arith.constant 0 : i32
    %c0_i32_0 = arith.constant 0 : i32
    %c0_i32_1 = arith.constant 0 : i32
    return %c0_i32, %c0_i32_0 : i32, i32
  }
  func.func @transform_3(%arg0: i32) -> (i32, i32) {
    %c0_i32 = arith.constant 0 : i32
    %c0_i32_0 = arith.constant 0 : i32
    %c0_i32_1 = arith.constant 0 : i32
    return %c0_i32, %c0_i32_0 : i32, i32
  }
  func.func @transform_4(%arg0: i32) -> (i32, i32) {
    %c0_i32 = arith.constant 0 : i32
    %c0_i32_0 = arith.constant 0 : i32
    %c0_i32_1 = arith.constant 0 : i32
    return %c0_i32, %c0_i32_0 : i32, i32
  }
  func.func @transform_5(%arg0: i32) -> (i32, i32) {
    %c0_i32 = arith.constant 0 : i32
    %c0_i32_0 = arith.constant 0 : i32
    return %c0_i32, %arg0 : i32, i32
  }
}

</mosaic_0001>

<llo_original>
// kernel: tpu_custom_call.1
$region0: #{tpu_custom_call.1}
  #allocation0 [shape = 'u32[]', space=smem, size = 0x4, offset = 0x4, fixed_abs, tag = 'smem constant byte address 0x4 - core index']
  #allocation1 [shape = 'u32[144,128]{1,0:T(1,128)}', space=vmem, size = 0x12000, scoped, tag = 'internal scratch']
  %s0 = inlined_call_operand.vmem [shape: f32[4,256], index: 0, kind: input, shape index: {}]
  %s1 = inlined_call_operand.vmem [shape: f32[10,4], index: 1, kind: input, shape index: {}]
  %s2 = inlined_call_operand.vmem [shape: f32[10,1], index: 2, kind: input, shape index: {}]
  %s3 = inlined_call_operand.vmem [shape: f32[3,10], index: 3, kind: input, shape index: {}]
  %s4 = inlined_call_operand.vmem [shape: f32[3,1], index: 4, kind: input, shape index: {}]
  %s5 = inlined_call_operand.hbm [shape: f32[3,256], index: 5, kind: output, shape index: {}]
  %s6 = sld [smem:[#allocation0]]
  $region53: #{tpu_custom_call.1} parent=0
    _
  %s8 = ssub.s32 1, %s6
  %s9 = scalar_select 0, %s8, %s6
  $region1: #{tpu_custom_call.1} parent=0
    #allocation2 [shape = 'u8[4096]{0}', space=vmem, size = 0x1000, scoped, tag = 'output window, operand 0']
    #allocation3 [shape = 's32[2]{0}', space=sflag, size = 0x8, scoped, tag = 'scoped memory for tpu_custom_call.1']
    %10 = vsyncpa [#allocation3], 0
    %s11 = scalar_lea.sflag [#allocation3], 1
    %12 = vsyncpa %s11, 0
    loop: start=0, step=1, limit=4
    $region2: #{tpu_custom_call.1} parent=1 // loop_pre_header
      _
    $region3: #{tpu_custom_call.1} parent=1 // loop_header
      %s14 = sphi 0, %s18
      %p15 = scmp.ge.s32.totalorder %s14, 4
      %s24 = sphi 0, %s26
      %s27 = sphi 0, %s24
      %s28 = sphi 0, %s27
      %s44 = sphi 0, %s28
      %s48 = sphi 0, %s48
      %s50 = sphi 0, %s48
      %s51 = sphi 0, %s50
      %s65 = sphi 0, %s51
      %s69 = sphi 0, %s69
      %s71 = sphi 0, %s69
      %s72 = sphi 0, %s71
      %s86 = sphi 0, %s72
      %s90 = sphi 0, %s90
      %s92 = sphi 0, %s90
      %s93 = sphi 0, %s92
      %s107 = sphi 0, %s93
      %s111 = sphi 0, %s111
      %s113 = sphi 0, %s111
      %s114 = sphi 0, %s113
      %s128 = sphi 0, %s114
      %s134 = sphi 0, %s136
      %s137 = sphi 0, %s134
      %s138 = sphi 0, %s137
      %s154 = sphi 0, %s138
    $region4: #{tpu_custom_call.1} parent=1 // loop_header_branch
      %17 = sbr.rel (%p15) target = $region8
    $region5: #{tpu_custom_call.1} parent=1 // loop_body
      %s19 = ssub.s32 %s14, 1
      %s20 = ssub.s32 %s14, 2
      %s21 = sadd.s32 %s14, 1
      %s22 = ssub.s32 %s14, %s21
      %p23 = scmp.eq.s32.totalorder %s22, 0
      %s25 = sadd.s32 %s24, 1
      %s26 = scalar_select %p23, %s24, %s25
      %p29 = pneg %p23
      %p30 = scmp.eq.s32.totalorder %s14, 1
      %p31 = por %p29, %p30
      %p32 = scmp.ne.s32.totalorder %s24, %s27
      %p33 = scmp.eq.s32.totalorder %s14, 0
      %p34 = por %p32, %p33
      %p35 = scmp.ne.s32.totalorder %s24, %s27
      %p36 = scmp.eq.s32.totalorder %s19, 1
      %p37 = por %p35, %p36
      %p38 = scmp.ne.s32.totalorder %s27, %s28
      %p39 = scmp.eq.s32.totalorder %s19, 0
      %p40 = por %p38, %p39
      %p41 = scmp.ne.s32.totalorder %s27, %s28
      %p42 = scmp.eq.s32.totalorder %s20, 1
      %p43 = por %p41, %p42
      %p45 = scmp.ne.s32.totalorder %s28, %s44
      %p46 = scmp.eq.s32.totalorder %s20, 0
      %p47 = por %p45, %p46
      %s49 = sadd.s32 %s48, 1
      %p52 = scmp.eq.s32.totalorder %s14, 1
      %p53 = scmp.ne.s32.totalorder %s48, %s50
      %p54 = scmp.eq.s32.totalorder %s14, 0
      %p55 = por %p53, %p54
      %p56 = scmp.ne.s32.totalorder %s48, %s50
      %p57 = scmp.eq.s32.totalorder %s19, 1
      %p58 = por %p56, %p57
      %p59 = scmp.ne.s32.totalorder %s50, %s51
      %p60 = scmp.eq.s32.totalorder %s19, 0
      %p61 = por %p59, %p60
      %p62 = scmp.ne.s32.totalorder %s50, %s51
      %p63 = scmp.eq.s32.totalorder %s20, 1
      %p64 = por %p62, %p63
      %p66 = scmp.ne.s32.totalorder %s51, %s65
      %p67 = scmp.eq.s32.totalorder %s20, 0
      %p68 = por %p66, %p67
      %s70 = sadd.s32 %s69, 1
      %p73 = scmp.eq.s32.totalorder %s14, 1
      %p74 = scmp.ne.s32.totalorder %s69, %s71
      %p75 = scmp.eq.s32.totalorder %s14, 0
      %p76 = por %p74, %p75
      %p77 = scmp.ne.s32.totalorder %s69, %s71
      %p78 = scmp.eq.s32.totalorder %s19, 1
      %p79 = por %p77, %p78
      %p80 = scmp.ne.s32.totalorder %s71, %s72
      %p81 = scmp.eq.s32.totalorder %s19, 0
      %p82 = por %p80, %p81
      %p83 = scmp.ne.s32.totalorder %s71, %s72
      %p84 = scmp.eq.s32.totalorder %s20, 1
      %p85 = por %p83, %p84
      %p87 = scmp.ne.s32.totalorder %s72, %s86
      %p88 = scmp.eq.s32.totalorder %s20, 0
      %p89 = por %p87, %p88
      %s91 = sadd.s32 %s90, 1
      %p94 = scmp.eq.s32.totalorder %s14, 1
      %p95 = scmp.ne.s32.totalorder %s90, %s92
      %p96 = scmp.eq.s32.totalorder %s14, 0
      %p97 = por %p95, %p96
      %p98 = scmp.ne.s32.totalorder %s90, %s92
      %p99 = scmp.eq.s32.totalorder %s19, 1
      %p100 = por %p98, %p99
      %p101 = scmp.ne.s32.totalorder %s92, %s93
      %p102 = scmp.eq.s32.totalorder %s19, 0
      %p103 = por %p101, %p102
      %p104 = scmp.ne.s32.totalorder %s92, %s93
      %p105 = scmp.eq.s32.totalorder %s20, 1
      %p106 = por %p104, %p105
      %p108 = scmp.ne.s32.totalorder %s93, %s107
      %p109 = scmp.eq.s32.totalorder %s20, 0
      %p110 = por %p108, %p109
      %s112 = sadd.s32 %s111, 1
      %p115 = scmp.eq.s32.totalorder %s14, 1
      %p116 = scmp.ne.s32.totalorder %s111, %s113
      %p117 = scmp.eq.s32.totalorder %s14, 0
      %p118 = por %p116, %p117
      %p119 = scmp.ne.s32.totalorder %s111, %s113
      %p120 = scmp.eq.s32.totalorder %s19, 1
      %p121 = por %p119, %p120
      %p122 = scmp.ne.s32.totalorder %s113, %s114
      %p123 = scmp.eq.s32.totalorder %s19, 0
      %p124 = por %p122, %p123
      %p125 = scmp.ne.s32.totalorder %s113, %s114
      %p126 = scmp.eq.s32.totalorder %s20, 1
      %p127 = por %p125, %p126
      %p129 = scmp.ne.s32.totalorder %s114, %s128
      %p130 = scmp.eq.s32.totalorder %s20, 0
      %p131 = por %p129, %p130
      %s132 = ssub.s32 %s14, %s21
      %p133 = scmp.eq.s32.totalorder %s132, 0
      %s135 = sadd.s32 %s134, 1
      %s136 = scalar_select %p133, %s134, %s135
      %p139 = pneg %p133
      %p140 = scmp.eq.s32.totalorder %s14, 1
      %p141 = por %p139, %p140
      %p142 = scmp.ne.s32.totalorder %s134, %s137
      %p143 = scmp.eq.s32.totalorder %s14, 0
      %p144 = por %p142, %p143
      %p145 = scmp.ne.s32.totalorder %s134, %s137
      %p146 = scmp.eq.s32.totalorder %s19, 1
      %p147 = por %p145, %p146
      %p148 = scmp.ne.s32.totalorder %s137, %s138
      %p149 = scmp.eq.s32.totalorder %s19, 0
      %p150 = por %p148, %p149
      %p151 = scmp.ne.s32.totalorder %s137, %s138
      %p152 = scmp.eq.s32.totalorder %s20, 1
      %p153 = por %p151, %p152
      %p155 = scmp.ne.s32.totalorder %s138, %s154
      %p156 = scmp.eq.s32.totalorder %s20, 0
      %p157 = por %p155, %p156
      %p158 = scmp.le.s32.totalorder 1, %s14
      %p159 = scmp.lt.s32.totalorder %s14, 3
      %p160 = pnand %p158, %p159
      %p161 = pneg %p160
      // Predicated region
      $region9: #{tpu_custom_call.1} parent=5 // pred_check
        _
      $region10: #{tpu_custom_call.1} parent=5 // pred_check_branch
        %163 = sbr.rel (%p160) target = $region12
      $region11: #{tpu_custom_call.1} parent=5 // pred_region
        %s164 = ssub.s32 %s14, 1
        // Predicated region
        $region13: #{tpu_custom_call.1} parent=11 // pred_check
          %p165 = pneg %p61
        $region14: #{tpu_custom_call.1} parent=11 // pred_check_branch
          %167 = sbr.rel (%p165) target = $region16
        $region15: #{tpu_custom_call.1} parent=11 // pred_region
          _
        $region16: #{tpu_custom_call.1} parent=11 // pred_fallthru
          _
        // Predicated region
        $region17: #{tpu_custom_call.1} parent=11 // pred_check
          %p168 = pneg %p82
        $region18: #{tpu_custom_call.1} parent=11 // pred_check_branch
          %170 = sbr.rel (%p168) target = $region20
        $region19: #{tpu_custom_call.1} parent=11 // pred_region
          _
        $region20: #{tpu_custom_call.1} parent=11 // pred_fallthru
          _
        // Predicated region
        $region21: #{tpu_custom_call.1} parent=11 // pred_check
          %p171 = pneg %p103
        $region22: #{tpu_custom_call.1} parent=11 // pred_check_branch
          %173 = sbr.rel (%p171) target = $region24
        $region23: #{tpu_custom_call.1} parent=11 // pred_region
          _
        $region24: #{tpu_custom_call.1} parent=11 // pred_fallthru
          _
        // Predicated region
        $region25: #{tpu_custom_call.1} parent=11 // pred_check
          %p174 = pneg %p124
        $region26: #{tpu_custom_call.1} parent=11 // pred_check_branch
          %176 = sbr.rel (%p174) target = $region28
        $region27: #{tpu_custom_call.1} parent=11 // pred_region
          _
        $region28: #{tpu_custom_call.1} parent=11 // pred_fallthru
          _
      $region12: #{tpu_custom_call.1} parent=5 // pred_fallthru
        _
      %p177 = scmp.lt.s32.totalorder %s14, 2
      // Predicated region
      $region29: #{tpu_custom_call.1} parent=5 // pred_check
        %p178 = pneg %p177
      $region30: #{tpu_custom_call.1} parent=5 // pred_check_branch
        %180 = sbr.rel (%p178) target = $region32
      $region31: #{tpu_custom_call.1} parent=5 // pred_region
        // Predicated region
        $region33: #{tpu_custom_call.1} parent=31 // pred_check
          %p181 = pneg %p34
        $region34: #{tpu_custom_call.1} parent=31 // pred_check_branch
          %183 = sbr.rel (%p181) target = $region36
        $region35: #{tpu_custom_call.1} parent=31 // pred_region
          %p184 = scmp.lt.s32.totalorder %s14, 1
          %s185 = scalar_select %p184, %s14, 1
          %s186 = smul.addr %s185, 4
          %s187 = scalar_lea.vmem %s0, %s186
        $region36: #{tpu_custom_call.1} parent=31 // pred_fallthru
          _
      $region32: #{tpu_custom_call.1} parent=5 // pred_fallthru
        _
      %p188 = scmp.le.s32.totalorder 1, %s14
      %p189 = scmp.lt.s32.totalorder %s14, 3
      %p190 = pnand %p188, %p189
      %p191 = pneg %p190
      // Predicated region
      $region37: #{tpu_custom_call.1} parent=5 // pred_check
        _
      $region38: #{tpu_custom_call.1} parent=5 // pred_check_branch
        %193 = sbr.rel (%p190) target = $region40
      $region39: #{tpu_custom_call.1} parent=5 // pred_region
        %s194 = ssub.s32 %s14, 1
        %p195 = scmp.lt.s32.totalorder %s19, 1
        %s196 = scalar_select %p195, %s19, 1
        %s197 = smul.addr %s196, 4
        %s198 = scalar_lea.vmem %s0, %s197
        %p199 = pneg %p40
        %p200 = pneg %p37
        %p201 = pneg %p61
        %p202 = pneg %p58
        %p203 = pneg %p82
        %p204 = pneg %p79
        %p205 = pneg %p103
        %p206 = pneg %p100
        %p207 = pneg %p124
        %p208 = pneg %p121
        %p209 = pneg %p150
        %p210 = pneg %p147
        %s211 = sand.u32 %s137, 1
        %s212 = scalar_lea.sflag [#allocation3], %s211
        %s213 = sand.u32 %s137, 1
        %s214 = smul.addr %s213, 4
        %s215 = scalar_lea.vmem [#allocation2], %s214
        %p216 = scmp.lt.s32.totalorder %s19, 1
        %s217 = scalar_select %p216, %s19, 1
        %s218 = smul.addr %s217, 4
        %s219 = scalar_lea.vmem %s0, %s218
        %v220 = vld [vmem:[%s219] sm:$0xf]
        %v221 = vld [vmem:[%s1] sm:$0xff]
        %v222 = vld [vmem:[%s1 + $0x8] sm:$0x3]
        %v223 = vld [vmem:[%s2] sm:$0xff]
        %v224 = vld [vmem:[%s2 + $0x8] sm:$0x3]
        %226 = vset.pattern.permute.xlu0 0
        %227 = vperm.xlu0 %226, %v223
        %v228 = vpop.permute.xlu0 %227
        %231 = vset.pattern.permute.xlu0 0
        %232 = vperm.xlu0 %231, %v224
        %v233 = vpop.permute.xlu0 %232
        %vm235 = vcmask 31744
        %v237 = vsel %vm235, %v221, 0
        %v240 = vsel %vm235, %v222, 0
        %vm242 = vcmask 1043456
        %v244 = vsel %vm242, %v220, 0
        %246 = vmatprep.subr.mxu0 0.0
        %247 = vmatpush1.msra.mxu0 %v244
        %248 = vmatprep.subr.mxu0 0.0
        %249 = vmatpush1.msra.mxu0 0.0
        %250 = vmatprep.subr.mxu0 0.0
        %251 = vmatpush1.msra.mxu0 0.0
        %252 = vmatprep.subr.mxu0 0.0
        %253 = vmatpush1.msra.mxu0 0.0
        %254 = vmatprep.subr.mxu0 0.0
        %255 = vmatpush1.msra.mxu0 0.0
        %256 = vmatprep.subr.mxu0 0.0
        %257 = vmatpush1.msra.mxu0 0.0
        %258 = vmatprep.subr.mxu0 0.0
        %259 = vmatpush1.msra.mxu0 0.0
        %260 = vmatprep.subr.mxu0 0.0
        %261 = vmatpush1.msra.mxu0 0.0
        %262 = vmatprep.subr.mxu0 0.0
        %263 = vmatpush1.msra.mxu0 0.0
        %264 = vmatprep.subr.mxu0 0.0
        %265 = vmatpush1.msra.mxu0 0.0
        %266 = vmatprep.subr.mxu0 0.0
        %267 = vmatpush1.msra.mxu0 0.0
        %268 = vmatprep.subr.mxu0 0.0
        %269 = vmatpush1.msra.mxu0 0.0
        %270 = vmatprep.subr.mxu0 0.0
        %271 = vmatpush1.msra.mxu0 0.0
        %272 = vmatprep.subr.mxu0 0.0
        %273 = vmatpush1.msra.mxu0 0.0
        %274 = vmatprep.subr.mxu0 0.0
        %275 = vmatpush1.msra.mxu0 0.0
        %276 = vmatprep.subr.mxu0 0.0
        %277 = vmatpush1.msra.mxu0 0.0
        %278 = vmatprep.subr.mxu0 0.0
        %279 = vmatpush1.msra.mxu0 0.0
        %280 = vmatprep.subr.mxu0 0.0
        %281 = vmatpush1.msra.mxu0 0.0
        %282 = vmatprep.subr.mxu0 0.0
        %283 = vmatpush1.msra.mxu0 0.0
        %284 = vmatprep.subr.mxu0 0.0
        %285 = vmatpush1.msra.mxu0 0.0
        %286 = vmatprep.subr.mxu0 0.0
        %287 = vmatpush1.msra.mxu0 0.0
        %288 = vmatprep.subr.mxu0 0.0
        %289 = vmatpush1.msra.mxu0 0.0
        %290 = vmatprep.subr.mxu0 0.0
        %291 = vmatpush1.msra.mxu0 0.0
        %292 = vmatprep.subr.mxu0 0.0
        %293 = vmatpush1.msra.mxu0 0.0
        %294 = vmatprep.subr.mxu0 0.0
        %295 = vmatpush1.msra.mxu0 0.0
        %296 = vmatprep.subr.mxu0 0.0
        %297 = vmatpush1.msra.mxu0 0.0
        %298 = vmatprep.subr.mxu0 0.0
        %299 = vmatpush1.msra.mxu0 0.0
        %300 = vmatprep.subr.mxu0 0.0
        %301 = vmatpush1.msra.mxu0 0.0
        %302 = vmatprep.subr.mxu0 0.0
        %303 = vmatpush1.msra.mxu0 0.0
        %304 = vmatprep.subr.mxu0 0.0
        %305 = vmatpush1.msra.mxu0 0.0
        %306 = vmatprep.subr.mxu0 0.0
        %307 = vmatpush1.msra.mxu0 0.0
        %308 = vmatprep.subr.mxu0 0.0
        %309 = vmatpush1.msra.mxu0 0.0
        %310 = vmatprep.mubr.f32.mxu0 0.0
        %311 = vmatmul.mubr.f32.gmra.mrb[0].mxu0 %v237
        %v312 = vpop.f32.mrb[0].mxu0
        %v313 = vadd.f32 %v228, %v312
        %v314 = vpop.f32.mrb[0].mxu0
        %315 = vmatprep.mubr.f32.mxu0 0.0
        %316 = vmatmul.mubr.f32.gmra.mrb[0].mxu0 %v240
        %v317 = vpop.f32.mrb[0].mxu0
        %v318 = vadd.f32 %v233, %v317
        %v319 = vpop.f32.mrb[0].mxu0
        %320 = vdwg.mxu0
        %v321 = vmax.f32 %v313, 0.0
        %v322 = vmax.f32 %v318, 0.0
        %v323 = vld [vmem:[%s3] sm:$0x7]
        %v324 = vld [vmem:[%s4] sm:$0x7]
        %326 = vset.pattern.permute.xlu0 0
        %327 = vperm.xlu0 %326, %v324
        %v328 = vpop.permute.xlu0 %327
        %vm330 = vcmask 80896
        %v332 = vsel %vm330, %v323, 0
        %vm334 = vcmask 1041408
        %v336 = vsel %vm334, %v322, 0
        %338 = vmatprep.subr.mxu0 0.0
        %339 = vmatpush1.msra.mxu0 %v321
        %340 = vmatprep.subr.mxu0 0.0
        %341 = vmatpush1.msra.mxu0 %v336
        %342 = vmatprep.subr.mxu0 0.0
        %343 = vmatpush1.msra.mxu0 0.0
        %344 = vmatprep.subr.mxu0 0.0
        %345 = vmatpush1.msra.mxu0 0.0
        %346 = vmatprep.subr.mxu0 0.0
        %347 = vmatpush1.msra.mxu0 0.0
        %348 = vmatprep.subr.mxu0 0.0
        %349 = vmatpush1.msra.mxu0 0.0
        %350 = vmatprep.subr.mxu0 0.0
        %351 = vmatpush1.msra.mxu0 0.0
        %352 = vmatprep.subr.mxu0 0.0
        %353 = vmatpush1.msra.mxu0 0.0
        %354 = vmatprep.subr.mxu0 0.0
        %355 = vmatpush1.msra.mxu0 0.0
        %356 = vmatprep.subr.mxu0 0.0
        %357 = vmatpush1.msra.mxu0 0.0
        %358 = vmatprep.subr.mxu0 0.0
        %359 = vmatpush1.msra.mxu0 0.0
        %360 = vmatprep.subr.mxu0 0.0
        %361 = vmatpush1.msra.mxu0 0.0
        %362 = vmatprep.subr.mxu0 0.0
        %363 = vmatpush1.msra.mxu0 0.0
        %364 = vmatprep.subr.mxu0 0.0
        %365 = vmatpush1.msra.mxu0 0.0
        %366 = vmatprep.subr.mxu0 0.0
        %367 = vmatpush1.msra.mxu0 0.0
        %368 = vmatprep.subr.mxu0 0.0
        %369 = vmatpush1.msra.mxu0 0.0
        %370 = vmatprep.subr.mxu0 0.0
        %371 = vmatpush1.msra.mxu0 0.0
        %372 = vmatprep.subr.mxu0 0.0
        %373 = vmatpush1.msra.mxu0 0.0
        %374 = vmatprep.subr.mxu0 0.0
        %375 = vmatpush1.msra.mxu0 0.0
        %376 = vmatprep.subr.mxu0 0.0
        %377 = vmatpush1.msra.mxu0 0.0
        %378 = vmatprep.subr.mxu0 0.0
        %379 = vmatpush1.msra.mxu0 0.0
        %380 = vmatprep.subr.mxu0 0.0
        %381 = vmatpush1.msra.mxu0 0.0
        %382 = vmatprep.subr.mxu0 0.0
        %383 = vmatpush1.msra.mxu0 0.0
        %384 = vmatprep.subr.mxu0 0.0
        %385 = vmatpush1.msra.mxu0 0.0
        %386 = vmatprep.subr.mxu0 0.0
        %387 = vmatpush1.msra.mxu0 0.0
        %388 = vmatprep.subr.mxu0 0.0
        %389 = vmatpush1.msra.mxu0 0.0
        %390 = vmatprep.subr.mxu0 0.0
        %391 = vmatpush1.msra.mxu0 0.0
        %392 = vmatprep.subr.mxu0 0.0
        %393 = vmatpush1.msra.mxu0 0.0
        %394 = vmatprep.subr.mxu0 0.0
        %395 = vmatpush1.msra.mxu0 0.0
        %396 = vmatprep.subr.mxu0 0.0
        %397 = vmatpush1.msra.mxu0 0.0
        %398 = vmatprep.subr.mxu0 0.0
        %399 = vmatpush1.msra.mxu0 0.0
        %400 = vmatprep.subr.mxu0 0.0
        %401 = vmatpush1.msra.mxu0 0.0
        %402 = vmatprep.mubr.f32.mxu0 0.0
        %403 = vmatmul.mubr.f32.gmra.mrb[0].mxu0 %v332
        %v404 = vpop.f32.mrb[0].mxu0
        %v405 = vadd.f32 %v328, %v404
        %v406 = vpop.f32.mrb[0].mxu0
        %407 = vdwg.mxu0
        %408 = vst [vmem:[%s215] sm:$0x7] %v405
        %s409 = sand.u32 %s137, 1
        %s410 = scalar_lea.sflag [#allocation3], %s409
        %s411 = sand.u32 %s137, 1
        %s412 = smul.addr %s411, 4
        %s413 = scalar_lea.vmem [#allocation2], %s412
        // Predicated region
        $region41: #{tpu_custom_call.1} parent=39 // pred_check
          %p414 = pneg %p147
        $region42: #{tpu_custom_call.1} parent=39 // pred_check_branch
          %416 = sbr.rel (%p414) target = $region44
        $region43: #{tpu_custom_call.1} parent=39 // pred_region
          %s418 = ssub.s32 64, 64
          %419 = vsyncadd %s410, %s418
          %s420 = smul.addr %s19, 64
          %s421 = scalar_lea.hbm %s5, %s420
          %s423 = sshll.u32 %s413, 4
          %s424 = int_to_ptr.vmem [resolvable:$true] %s423
          %426 = dma.vmem_to_hbm [thread:$0]  %s424, 64, %s421, %s410
        $region44: #{tpu_custom_call.1} parent=39 // pred_fallthru
          _
      $region40: #{tpu_custom_call.1} parent=5 // pred_fallthru
        _
      %p427 = scmp.le.s32.totalorder 2, %s14
      // Predicated region
      $region45: #{tpu_custom_call.1} parent=5 // pred_check
        %p428 = pneg %p427
      $region46: #{tpu_custom_call.1} parent=5 // pred_check_branch
        %430 = sbr.rel (%p428) target = $region48
      $region47: #{tpu_custom_call.1} parent=5 // pred_region
        %s431 = ssub.s32 %s14, 2
        // Predicated region
        $region49: #{tpu_custom_call.1} parent=47 // pred_check
          %p432 = pneg %p153
        $region50: #{tpu_custom_call.1} parent=47 // pred_check_branch
          %434 = sbr.rel (%p432) target = $region52
        $region51: #{tpu_custom_call.1} parent=47 // pred_region
          %s435 = sand.u32 %s138, 1
          %s436 = scalar_lea.sflag [#allocation3], %s435
          %s437 = sand.u32 %s138, 1
          %s438 = smul.addr %s437, 4
          %s439 = scalar_lea.vmem [#allocation2], %s438
          %440 = dma.done %s436, 64
        $region52: #{tpu_custom_call.1} parent=47 // pred_fallthru
          _
      $region48: #{tpu_custom_call.1} parent=5 // pred_fallthru
        _
    $region6: #{tpu_custom_call.1} parent=1 // loop_footer
      %s18 = sadd.s32 1, %s14
    $region7: #{tpu_custom_call.1} parent=1 // loop_footer_branch
      %13 = sbr.rel target = $region3
    $region8: #{tpu_custom_call.1} parent=1 // loop_exit
      _
    %441 = vsyncpa [#allocation3], 1
    %s442 = scalar_lea.sflag [#allocation3], 1
    %443 = vsyncpa %s442, 1

</llo_original>
